<compile_context>
chip_gen: v5e
topology: v5e:2x2
jax: 0.10.0
libtpu: 0.0.40
codegen_flags: <defaults>
</compile_context>

<pallas_src>
import functools

import jax
import jax.numpy as jnp
from jax.experimental import pallas as pl
from jax.experimental.pallas import tpu as pltpu


def _round_up(x: int, m: int) -> int:
    return ((x + m - 1) // m) * m


def _swiglu_kernel(x_ref, w13_ref, b13_ref, w2_ref, b2_ref, o_ref, *, hdim_p):
    # One fused body per token tile: x @ [w1|w3] -> silu gate -> @ w2.
    x = x_ref[...]

    # Stage 1: single wide MXU pass (both projections at once), f32 accumulate.
    h = jnp.dot(x, w13_ref[...], preferred_element_type=jnp.float32) + b13_ref[...]
    h1 = h[:, :hdim_p]          # lane-aligned split (hdim_p is a multiple of 128)
    h3 = h[:, hdim_p:]

    # silu(h1) * h3 in f32 (sigmoid goes to the EUP, muls to the VPU).
    gated = (h1 * jax.nn.sigmoid(h1)) * h3

    # Stage 2: project back down; cast gate to weight dtype (no-op for f32).
    out = (
        jnp.dot(gated.astype(w2_ref.dtype), w2_ref[...],
                preferred_element_type=jnp.float32)
        + b2_ref[...]
    )
    o_ref[...] = out.astype(o_ref.dtype)


def swiglu_pallas(x2d, w1, b1, w2, b2, w3, b3, *, tm=256):
    """SwiGLU forward.

    x2d    : (M, in_dim) token rows.
    w1, w3 : (in_dim, hdim) pre-transposed nn.Linear weights; b1/b3: (1, hdim).
    w2     : (hdim, out_dim) pre-transposed;                  b2  : (1, out_dim).
    Returns (M, out_dim) in x2d.dtype.
    """
    M, in_dim = x2d.shape
    hdim = w1.shape[1]
    out_dim = w2.shape[1]
    dtype = x2d.dtype

    # Lane-align hidden and output dims (multiples of 128) with zero padding.
    hdim_p = _round_up(hdim, 128)
    out_p = _round_up(out_dim, 128)

    def pad2d(a, rows, cols):
        return jnp.pad(a, ((0, rows - a.shape[0]), (0, cols - a.shape[1])))

    # Fused first-stage weights [w1 | w3] and biases [b1 | b3].
    w13 = jnp.concatenate([pad2d(w1, in_dim, hdim_p),
                           pad2d(w3, in_dim, hdim_p)], axis=1)
    b13 = jnp.concatenate([pad2d(b1, 1, hdim_p),
                           pad2d(b3, 1, hdim_p)], axis=1)
    w2p = pad2d(w2, hdim_p, out_p)
    b2p = pad2d(b2, 1, out_p)

    # Token tile: multiple of 16 sublanes (works for f32 and bf16); pad M.
    tm_eff = min(tm, _round_up(M, 16))
    m_pad = _round_up(M, tm_eff)
    xp = jnp.pad(x2d, ((0, m_pad - M), (0, 0)))

    grid = (m_pad // tm_eff,)

    # Resident (whole-array-in-VMEM, single-buffered) operands.
    resident = pl.BlockSpec(memory_space=pltpu.MemorySpace.VMEM)

    out = pl.pallas_call(
        functools.partial(_swiglu_kernel, hdim_p=hdim_p),
        out_shape=jax.ShapeDtypeStruct((m_pad, out_p), dtype),
        grid_spec=pltpu.PrefetchScalarGridSpec(
            num_scalar_prefetch=0,
            grid=grid,
            in_specs=[
                pl.BlockSpec((tm_eff, in_dim), lambda i: (i, 0)),  # x rows (pipelined)
                resident,   # [w1|w3]
                resident,   # [b1|b3]
                resident,   # w2
                resident,   # b2
            ],
            out_specs=pl.BlockSpec((tm_eff, out_p), lambda i: (i, 0)),
        ),
        compiler_params=pltpu.CompilerParams(
            dimension_semantics=("parallel",),   # token axis -> 2 TCs on v7x
            vmem_limit_bytes=48 * 1024 * 1024,   # above scoped default, v7x-safe
        ),
    )(xp, w13, b13, w2p, b2p)

    # TODO(synk): for LLM-size in_dim/hdim on v7x (64 MiB VMEM), add a second
    # "arbitrary" grid axis tiling hdim with a VMEM f32 accumulator instead of
    # keeping [w1|w3] and w2 fully resident.
    return out[:M, :out_dim]


def init_linear(key, fan_in, fan_out, dtype=jnp.float32):
    """nn.Linear-style init U(-1/sqrt(fan_in), 1/sqrt(fan_in)); weight returned
    pre-transposed as (fan_in, fan_out), bias as (1, fan_out)."""
    kw, kb = jax.random.split(key)
    bound = 1.0 / (fan_in ** 0.5)
    w = jax.random.uniform(kw, (fan_in, fan_out), dtype, -bound, bound)
    b = jax.random.uniform(kb, (1, fan_out), dtype, -bound, bound)
    return w, b


if __name__ == "__main__":
    # Module config: in_dim=32 -> hdim = int(32 * 4 * 2/3) = 85, out_dim=32.
    batch, seq, in_dim = 2, 8, 32
    out_dim = in_dim
    hdim = int(in_dim * 4 * (2 / 3))  # 85, matches the PyTorch module exactly

    key = jax.random.PRNGKey(0)
    kx, k1, k2, k3 = jax.random.split(key, 4)

    x = jax.random.normal(kx, (batch, seq, in_dim), jnp.float32)

    w1, b1 = init_linear(k1, in_dim, hdim)   # self.w1
    w2, b2 = init_linear(k2, hdim, out_dim)  # self.w2
    w3, b3 = init_linear(k3, in_dim, hdim)   # self.w3

    # Flatten batch dims to token rows, run the fused kernel, reshape back.
    x2d = x.reshape(batch * seq, in_dim)
    y2d = swiglu_pallas(x2d, w1, b1, w2, b2, w3, b3, tm=256)
    y = y2d.reshape(batch, seq, out_dim)
    jax.block_until_ready(y)

    # Pure-JAX reference for correctness.
    h1 = x2d @ w1 + b1
    h3 = x2d @ w3 + b3
    ref = (((h1 * jax.nn.sigmoid(h1)) * h3) @ w2 + b2).reshape(batch, seq, out_dim)

    assert y.shape == (batch, seq, out_dim)
    assert jnp.allclose(y, ref, atol=1e-4, rtol=1e-4), float(jnp.max(jnp.abs(y - ref)))
    print("KERNEL_OK")
</pallas_src>

<mosaic_0001>
module attributes {stable_mosaic.version = 11 : i64} {
  func.func @_swiglu_kernel(%arg0: i32, %arg1: memref<16x32xf32, #tpu.memory_space<vmem>>, %arg2: memref<32x256xf32, #tpu.memory_space<vmem>>, %arg3: memref<1x256xf32, #tpu.memory_space<vmem>>, %arg4: memref<128x128xf32, #tpu.memory_space<vmem>>, %arg5: memref<1x128xf32, #tpu.memory_space<vmem>>, %arg6: memref<16x128xf32, #tpu.memory_space<vmem>>) attributes {dimension_semantics = [#tpu.dimension_semantics<parallel>], iteration_bounds = array<i64: 1>, scalar_prefetch = 0 : i64, scratch_operands = 0 : i64, tpu.core_type = #tpu.core_type<tc>, window_params = [{transform_indices = @transform_0, window_bounds = array<i64: 16, 32>}, {pipeline_mode = #tpu.pipeline_mode<synchronous>, transform_indices = @transform_1, window_bounds = array<i64: 32, 256>}, {pipeline_mode = #tpu.pipeline_mode<synchronous>, transform_indices = @transform_2, window_bounds = array<i64: 1, 256>}, {pipeline_mode = #tpu.pipeline_mode<synchronous>, transform_indices = @transform_3, window_bounds = array<i64: 128, 128>}, {pipeline_mode = #tpu.pipeline_mode<synchronous>, transform_indices = @transform_4, window_bounds = array<i64: 1, 128>}, {transform_indices = @transform_5, window_bounds = array<i64: 16, 128>}]} {
    %c0 = arith.constant 0 : index
    %c0_0 = arith.constant 0 : index
    %0 = vector.load %arg1[%c0, %c0_0] : memref<16x32xf32, #tpu.memory_space<vmem>>, vector<16x32xf32>
    %c0_1 = arith.constant 0 : index
    %c0_2 = arith.constant 0 : index
    %1 = vector.load %arg2[%c0_1, %c0_2] : memref<32x256xf32, #tpu.memory_space<vmem>>, vector<32x256xf32>
    %cst = arith.constant dense<0.000000e+00> : vector<16x256xf32>
    %2 = tpu.matmul %0, %1, %cst {dimension_numbers = #tpu.dot_dimension_numbers<[1], [0], [0], [1], [0, 0, 1, 1], [], []>} : vector<16x32xf32>, vector<32x256xf32>, vector<16x256xf32> -> vector<16x256xf32>
    %c0_3 = arith.constant 0 : index
    %c0_4 = arith.constant 0 : index
    %3 = vector.load %arg3[%c0_3, %c0_4] : memref<1x256xf32, #tpu.memory_space<vmem>>, vector<1x256xf32>
    %4 = vector.broadcast %3 : vector<1x256xf32> to vector<16x256xf32>
    %5 = arith.addf %2, %4 : vector<16x256xf32>
    %6 = vector.extract_strided_slice %5 {offsets = [0, 0], sizes = [16, 128], strides = [1, 1]} : vector<16x256xf32> to vector<16x128xf32>
    %7 = vector.extract_strided_slice %5 {offsets = [0, 128], sizes = [16, 128], strides = [1, 1]} : vector<16x256xf32> to vector<16x128xf32>
    %8 = arith.negf %6 : vector<16x128xf32>
    %9 = math.exp %8 : vector<16x128xf32>
    %cst_5 = arith.constant 1.000000e+00 : f32
    %10 = vector.broadcast %cst_5 : f32 to vector<16x128xf32>
    %11 = arith.addf %10, %9 : vector<16x128xf32>
    %12 = arith.divf %10, %11 : vector<16x128xf32>
    %13 = arith.mulf %6, %12 : vector<16x128xf32>
    %14 = arith.mulf %13, %7 : vector<16x128xf32>
    %c0_6 = arith.constant 0 : index
    %c0_7 = arith.constant 0 : index
    %15 = vector.load %arg4[%c0_6, %c0_7] : memref<128x128xf32, #tpu.memory_space<vmem>>, vector<128x128xf32>
    %cst_8 = arith.constant dense<0.000000e+00> : vector<16x128xf32>
    %16 = tpu.matmul %14, %15, %cst_8 {dimension_numbers = #tpu.dot_dimension_numbers<[1], [0], [0], [1], [0, 0, 1, 1], [], []>} : vector<16x128xf32>, vector<128x128xf32>, vector<16x128xf32> -> vector<16x128xf32>
    %c0_9 = arith.constant 0 : index
    %c0_10 = arith.constant 0 : index
    %17 = vector.load %arg5[%c0_9, %c0_10] : memref<1x128xf32, #tpu.memory_space<vmem>>, vector<1x128xf32>
    %18 = vector.broadcast %17 : vector<1x128xf32> to vector<16x128xf32>
    %19 = arith.addf %16, %18 : vector<16x128xf32>
    %c0_11 = arith.constant 0 : index
    %c0_12 = arith.constant 0 : index
    %20 = vector.load %arg6[%c0_11, %c0_12] : memref<16x128xf32, #tpu.memory_space<vmem>>, vector<16x128xf32>
    tpu.vector_store %arg6[%c0_11, %c0_12], %19 {strides = array<i32>} : memref<16x128xf32, #tpu.memory_space<vmem>>, vector<16x128xf32>,
    return
  }
  func.func @transform_0(%arg0: i32) -> (i32, i32) {
    %c0_i32 = arith.constant 0 : i32
    %c0_i32_0 = arith.constant 0 : i32
    return %arg0, %c0_i32 : i32, i32
  }
  func.func @transform_1(%arg0: i32) -> (i32, i32) {
    %c0_i32 = arith.constant 0 : i32
    %c0_i32_0 = arith.constant 0 : i32
    %c0_i32_1 = arith.constant 0 : i32
    return %c0_i32, %c0_i32_0 : i32, i32
  }
  func.func @transform_2(%arg0: i32) -> (i32, i32) {
    %c0_i32 = arith.constant 0 : i32
    %c0_i32_0 = arith.constant 0 : i32
    %c0_i32_1 = arith.constant 0 : i32
    return %c0_i32, %c0_i32_0 : i32, i32
  }
  func.func @transform_3(%arg0: i32) -> (i32, i32) {
    %c0_i32 = arith.constant 0 : i32
    %c0_i32_0 = arith.constant 0 : i32
    %c0_i32_1 = arith.constant 0 : i32
    return %c0_i32, %c0_i32_0 : i32, i32
  }
  func.func @transform_4(%arg0: i32) -> (i32, i32) {
    %c0_i32 = arith.constant 0 : i32
    %c0_i32_0 = arith.constant 0 : i32
    %c0_i32_1 = arith.constant 0 : i32
    return %c0_i32, %c0_i32_0 : i32, i32
  }
  func.func @transform_5(%arg0: i32) -> (i32, i32) {
    %c0_i32 = arith.constant 0 : i32
    %c0_i32_0 = arith.constant 0 : i32
    return %arg0, %c0_i32 : i32, i32
  }
}

</mosaic_0001>

<llo_original>
// kernel: tpu_custom_call.1
$region0: #{tpu_custom_call.1}
  #allocation0 [shape = 'u32[]', space=smem, size = 0x4, offset = 0x4, fixed_abs, tag = 'smem constant byte address 0x4 - core index']
  #allocation1 [shape = 'u32[72,128]{1,0:T(1,128)}', space=vmem, size = 0x9000, scoped, tag = 'internal scratch']
  %s0 = inlined_call_operand.hbm [shape: f32[16,32], index: 0, kind: input, shape index: {}]
  %s1 = inlined_call_operand.hbm [shape: f32[32,256], index: 1, kind: input, shape index: {}]
  %s2 = inlined_call_operand.hbm [shape: f32[1,256], index: 2, kind: input, shape index: {}]
  %s3 = inlined_call_operand.hbm [shape: f32[128,128], index: 3, kind: input, shape index: {}]
  %s4 = inlined_call_operand.vmem [shape: f32[1,128], index: 4, kind: input, shape index: {}]
  %s5 = inlined_call_operand.hbm [shape: f32[16,128], index: 5, kind: output, shape index: {}]
  %s6 = sld [smem:[#allocation0]]
  $region46: #{tpu_custom_call.1} parent=0
    _
  %s8 = ssub.s32 1, %s6
  %s9 = scalar_select 0, %s8, %s6
  $region1: #{tpu_custom_call.1} parent=0
    #allocation2 [shape = 'u8[8192]{0}', space=vmem, size = 0x2000, scoped, tag = 'input window, operand 0, single buffered']
    #allocation3 [shape = 's32[1]{0}', space=sflag, size = 0x4, scoped, tag = 'scoped memory for tpu_custom_call.1']
    #allocation4 [shape = 's32[1]{0}', space=sflag, size = 0x4, scoped, tag = 'scoped memory for tpu_custom_call.1']
    #allocation5 [shape = 'u8[32768]{0}', space=vmem, size = 0x8000, scoped, tag = 'input window, operand 1, single buffered']
    #allocation6 [shape = 's32[1]{0}', space=sflag, size = 0x4, scoped, tag = 'scoped memory for tpu_custom_call.1']
    #allocation7 [shape = 'u8[1024]{0}', space=vmem, size = 0x400, scoped, tag = 'input window, operand 2, single buffered']
    #allocation8 [shape = 'u8[65536]{0}', space=vmem, size = 0x10000, scoped, tag = 'input window, operand 3, single buffered']
    #allocation9 [shape = 's32[1]{0}', space=sflag, size = 0x4, scoped, tag = 'scoped memory for tpu_custom_call.1']
    #allocation10 [shape = 'u8[8192]{0}', space=vmem, size = 0x2000, scoped, tag = 'output window, operand 0, single buffered']
    %10 = vsyncpa [#allocation3], 0
    %11 = vsyncpa [#allocation6], 0
    %12 = vsyncpa [#allocation9], 0
    %13 = vsyncpa [#allocation4], 0
    // Predicated region
    $region2: #{tpu_custom_call.1} parent=1 // pred_check
      _
    $region3: #{tpu_custom_call.1} parent=1 // pred_check_branch
      %15 = sbr.rel (0) target = $region5
    $region4: #{tpu_custom_call.1} parent=1 // pred_region
      %17 = vsyncadd [#allocation3], 0
      %s18 = sshll.u32 %s0, 4
      %s19 = int_to_ptr.hbm [resolvable:$true] %s18
      %s20 = sshll.u32 [#allocation2], 4
      %s21 = int_to_ptr.vmem [resolvable:$true] %s20
      %26 = dma.hbm_to_vmem [thread:$0]  %s19, 256, %s21, [#allocation3], 128, 128, 8
    $region5: #{tpu_custom_call.1} parent=1 // pred_fallthru
      _
    // Predicated region
    $region6: #{tpu_custom_call.1} parent=1 // pred_check
      _
    $region7: #{tpu_custom_call.1} parent=1 // pred_check_branch
      %28 = sbr.rel (0) target = $region9
    $region8: #{tpu_custom_call.1} parent=1 // pred_region
      %30 = vsyncadd [#allocation6], 0
      %s31 = sshll.u32 %s1, 4
      %s32 = int_to_ptr.hbm [resolvable:$true] %s31
      %s33 = sshll.u32 [#allocation5], 4
      %s34 = int_to_ptr.vmem [resolvable:$true] %s33
      %39 = dma.hbm_to_vmem [thread:$0]  %s32, 1024, %s34, [#allocation6], 256, 256, 16
    $region9: #{tpu_custom_call.1} parent=1 // pred_fallthru
      _
    // Predicated region
    $region10: #{tpu_custom_call.1} parent=1 // pred_check
      _
    $region11: #{tpu_custom_call.1} parent=1 // pred_check_branch
      %41 = sbr.rel (0) target = $region13
    $region12: #{tpu_custom_call.1} parent=1 // pred_region
      %43 = vsyncadd [#allocation6], 0
      %s45 = sshll.u32 %s2, 4
      %s46 = int_to_ptr.hbm [resolvable:$true] %s45
      %s47 = sshll.u32 [#allocation7], 4
      %s48 = int_to_ptr.vmem [resolvable:$true] %s47
      %50 = dma.hbm_to_vmem [thread:$0]  %s46, 32, %s48, [#allocation6]
    $region13: #{tpu_custom_call.1} parent=1 // pred_fallthru
      _
    // Predicated region
    $region14: #{tpu_custom_call.1} parent=1 // pred_check
      _
    $region15: #{tpu_custom_call.1} parent=1 // pred_check_branch
      %52 = sbr.rel (0) target = $region17
    $region16: #{tpu_custom_call.1} parent=1 // pred_region
      %54 = vsyncadd [#allocation9], 0
      %s55 = sshll.u32 %s3, 4
      %s56 = int_to_ptr.hbm [resolvable:$true] %s55
      %s57 = sshll.u32 [#allocation8], 4
      %s58 = int_to_ptr.vmem [resolvable:$true] %s57
      %63 = dma.hbm_to_vmem [thread:$0]  %s56, 2048, %s58, [#allocation9], 128, 128, 8
    $region17: #{tpu_custom_call.1} parent=1 // pred_fallthru
      _
    // Predicated region
    $region18: #{tpu_custom_call.1} parent=1 // pred_check
      _
    $region19: #{tpu_custom_call.1} parent=1 // pred_check_branch
      %65 = sbr.rel (0) target = $region21
    $region20: #{tpu_custom_call.1} parent=1 // pred_region
      _
    $region21: #{tpu_custom_call.1} parent=1 // pred_fallthru
      _
    // Predicated region
    $region22: #{tpu_custom_call.1} parent=1 // pred_check
      _
    $region23: #{tpu_custom_call.1} parent=1 // pred_check_branch
      %67 = sbr.rel (0) target = $region25
    $region24: #{tpu_custom_call.1} parent=1 // pred_region
      %69 = dma.done [#allocation3], 256
    $region25: #{tpu_custom_call.1} parent=1 // pred_fallthru
      _
    // Predicated region
    $region26: #{tpu_custom_call.1} parent=1 // pred_check
      _
    $region27: #{tpu_custom_call.1} parent=1 // pred_check_branch
      %71 = sbr.rel (0) target = $region29
    $region28: #{tpu_custom_call.1} parent=1 // pred_region
      %73 = dma.done [#allocation6], 1024
    $region29: #{tpu_custom_call.1} parent=1 // pred_fallthru
      _
    // Predicated region
    $region30: #{tpu_custom_call.1} parent=1 // pred_check
      _
    $region31: #{tpu_custom_call.1} parent=1 // pred_check_branch
      %75 = sbr.rel (0) target = $region33
    $region32: #{tpu_custom_call.1} parent=1 // pred_region
      %77 = dma.done [#allocation6], 32
    $region33: #{tpu_custom_call.1} parent=1 // pred_fallthru
      _
    // Predicated region
    $region34: #{tpu_custom_call.1} parent=1 // pred_check
      _
    $region35: #{tpu_custom_call.1} parent=1 // pred_check_branch
      %79 = sbr.rel (0) target = $region37
    $region36: #{tpu_custom_call.1} parent=1 // pred_region
      %81 = dma.done [#allocation9], 2048
    $region37: #{tpu_custom_call.1} parent=1 // pred_fallthru
      _
    %v82 = vld [vmem:[#allocation2] sm:$0xff]
    %v83 = vld [vmem:[#allocation2 + $0x8] sm:$0xff]
    %v84 = vld [vmem:[#allocation5] sm:$0xff]
    %v85 = vld [vmem:[#allocation5 + $0x8] sm:$0xff]
    %v86 = vld [vmem:[#allocation5 + $0x10] sm:$0xff]
    %v87 = vld [vmem:[#allocation5 + $0x18] sm:$0xff]
    %v88 = vld [vmem:[#allocation5 + $0x20] sm:$0xff]
    %v89 = vld [vmem:[#allocation5 + $0x28] sm:$0xff]
    %v90 = vld [vmem:[#allocation5 + $0x30] sm:$0xff]
    %v91 = vld [vmem:[#allocation5 + $0x38] sm:$0xff]
    %v92 = vld [vmem:[#allocation7] sm:$0x3]
    %v94 = vperm.slane %v92, 0
    %v95 = vperm.slane %v92, 1
    %vm98 = vcmask 261120
    %v100 = vsel %vm98, %v82, 0
    %v103 = vsel %vm98, %v83, 0
    %105 = vmatpush.msra.mxu0 0.0
    %106 = vmatpush.msra.mxu0 0.0
    %107 = vmatpush.msra.mxu0 0.0
    %108 = vmatpush.msra.mxu0 0.0
    %109 = vmatpush.msra.mxu0 0.0
    %110 = vmatpush.msra.mxu0 0.0
    %111 = vmatpush.msra.mxu0 0.0
    %112 = vmatpush.msra.mxu0 0.0
    %113 = vmatpush.msra.mxu0 0.0
    %114 = vmatpush.msra.mxu0 0.0
    %115 = vmatpush.msra.mxu0 0.0
    %116 = vmatpush.msra.mxu0 0.0
    %117 = vmatpush.msra.mxu0 %v90
    %118 = vmatpush.msra.mxu0 %v88
    %119 = vmatpush.msra.mxu0 %v86
    %120 = vmatpush.msra.mxu0 %v84
    %121 = vmatmul.f32.gmra.mxu0 %v100
    %v122 = vpop.f32.mrf.mxu0
    %v123 = vadd.f32 %v94, %v122
    %124 = vmatmul.f32.gmra.mxu0 %v103
    %v125 = vpop.f32.mrf.mxu0
    %v126 = vadd.f32 %v94, %v125
    %127 = vdwg.mxu0
    %128 = vmatpush.msra.mxu0 0.0
    %129 = vmatpush.msra.mxu0 0.0
    %130 = vmatpush.msra.mxu0 0.0
    %131 = vmatpush.msra.mxu0 0.0
    %132 = vmatpush.msra.mxu0 0.0
    %133 = vmatpush.msra.mxu0 0.0
    %134 = vmatpush.msra.mxu0 0.0
    %135 = vmatpush.msra.mxu0 0.0
    %136 = vmatpush.msra.mxu0 0.0
    %137 = vmatpush.msra.mxu0 0.0
    %138 = vmatpush.msra.mxu0 0.0
    %139 = vmatpush.msra.mxu0 0.0
    %140 = vmatpush.msra.mxu0 %v91
    %141 = vmatpush.msra.mxu0 %v89
    %142 = vmatpush.msra.mxu0 %v87
    %143 = vmatpush.msra.mxu0 %v85
    %144 = vmatmul.f32.gmra.mxu0 %v100
    %v145 = vpop.f32.mrf.mxu0
    %v146 = vadd.f32 %v95, %v145
    %147 = vmatmul.f32.gmra.mxu0 %v103
    %v148 = vpop.f32.mrf.mxu0
    %v149 = vadd.f32 %v95, %v148
    %150 = vdwg.mxu0
    %v151 = vxor.u32 %v123, 2147483648
    %v152 = vxor.u32 %v126, 2147483648
    %v153 = vmul.f32 %v151, 1.442695
    %v154 = vpow.pop %v153
    %v155 = vmul.f32 %v152, 1.442695
    %v156 = vpow.pop %v155
    %v157 = vadd.f32 %v154, 1.0
    %v158 = vadd.f32 %v156, 1.0
    %v159 = vrcp.pop %v157
    %v160 = vmul.f32 %v157, %v159
    %v161 = vsub.f32 1.0, %v160
    %v162 = vmul.f32 %v159, %v161
    %v163 = vadd.f32 %v159, %v162
    %vm164 = vweird.f32 %v157
    %vm165 = vweird.f32 %v159
    %vm166 = vmor %vm164, %vm165
    %v167 = vsel %vm166, %v159, %v163
    %v168 = vand.u32 2147483647, %v157
    %vm169 = vcmp.eq.f32.partialorder %v168, 8.507059e+37
    %v170 = vand.u32 %v157, 2147483648
    %v171 = vor.u32 1.1754944e-38, %v170
    %v172 = vsel %vm169, %v171, %v167
    %v173 = vmul.f32 1.0, %v172
    %v174 = vrcp.pop %v158
    %v175 = vmul.f32 %v158, %v174
    %v176 = vsub.f32 1.0, %v175
    %v177 = vmul.f32 %v174, %v176
    %v178 = vadd.f32 %v174, %v177
    %vm179 = vweird.f32 %v158
    %vm180 = vweird.f32 %v174
    %vm181 = vmor %vm179, %vm180
    %v182 = vsel %vm181, %v174, %v178
    %v183 = vand.u32 2147483647, %v158
    %vm184 = vcmp.eq.f32.partialorder %v183, 8.507059e+37
    %v185 = vand.u32 %v158, 2147483648
    %v186 = vor.u32 1.1754944e-38, %v185
    %v187 = vsel %vm184, %v186, %v182
    %v188 = vmul.f32 1.0, %v187
    %v189 = vmul.f32 %v123, %v173
    %v190 = vmul.f32 %v126, %v188
    %v191 = vmul.f32 %v189, %v146
    %v192 = vmul.f32 %v190, %v149
    %v193 = vld [vmem:[#allocation8] sm:$0xff]
    %v194 = vld [vmem:[#allocation8 + $0x8] sm:$0xff]
    %v195 = vld [vmem:[#allocation8 + $0x10] sm:$0xff]
    %v196 = vld [vmem:[#allocation8 + $0x18] sm:$0xff]
    %v197 = vld [vmem:[#allocation8 + $0x20] sm:$0xff]
    %v198 = vld [vmem:[#allocation8 + $0x28] sm:$0xff]
    %v199 = vld [vmem:[#allocation8 + $0x30] sm:$0xff]
    %v200 = vld [vmem:[#allocation8 + $0x38] sm:$0xff]
    %v201 = vld [vmem:[#allocation8 + $0x40] sm:$0xff]
    %v202 = vld [vmem:[#allocation8 + $0x48] sm:$0xff]
    %v203 = vld [vmem:[#allocation8 + $0x50] sm:$0xff]
    %v204 = vld [vmem:[#allocation8 + $0x58] sm:$0xff]
    %v205 = vld [vmem:[#allocation8 + $0x60] sm:$0xff]
    %v206 = vld [vmem:[#allocation8 + $0x68] sm:$0xff]
    %v207 = vld [vmem:[#allocation8 + $0x70] sm:$0xff]
    %v208 = vld [vmem:[#allocation8 + $0x78] sm:$0xff]
    %v209 = vld [vmem:[%s4] sm:$0x1]
    %v211 = vperm.slane %v209, 0
    %213 = vmatpush.msra.mxu0 %v208
    %214 = vmatpush.msra.mxu0 %v207
    %215 = vmatpush.msra.mxu0 %v206
    %216 = vmatpush.msra.mxu0 %v205
    %217 = vmatpush.msra.mxu0 %v204
    %218 = vmatpush.msra.mxu0 %v203
    %219 = vmatpush.msra.mxu0 %v202
    %220 = vmatpush.msra.mxu0 %v201
    %221 = vmatpush.msra.mxu0 %v200
    %222 = vmatpush.msra.mxu0 %v199
    %223 = vmatpush.msra.mxu0 %v198
    %224 = vmatpush.msra.mxu0 %v197
    %225 = vmatpush.msra.mxu0 %v196
    %226 = vmatpush.msra.mxu0 %v195
    %227 = vmatpush.msra.mxu0 %v194
    %228 = vmatpush.msra.mxu0 %v193
    %229 = vmatmul.f32.gmra.mxu0 %v191
    %v230 = vpop.f32.mrf.mxu0
    %v231 = vadd.f32 %v211, %v230
    %232 = vmatmul.f32.gmra.mxu0 %v192
    %v233 = vpop.f32.mrf.mxu0
    %v234 = vadd.f32 %v211, %v233
    %235 = vdwg.mxu0
    %236 = vst [vmem:[#allocation10] sm:$0xff] %v231
    %237 = vst [vmem:[#allocation10 + $0x8] sm:$0xff] %v234
    // Predicated region
    $region38: #{tpu_custom_call.1} parent=1 // pred_check
      _
    $region39: #{tpu_custom_call.1} parent=1 // pred_check_branch
      %239 = sbr.rel (0) target = $region41
    $region40: #{tpu_custom_call.1} parent=1 // pred_region
      %241 = vsyncadd [#allocation4], 0
      %s242 = sshll.u32 [#allocation10], 4
      %s243 = int_to_ptr.vmem [resolvable:$true] %s242
      %s244 = sshll.u32 %s5, 4
      %s245 = int_to_ptr.hbm [resolvable:$true] %s244
      %250 = dma.vmem_to_hbm [thread:$0]  %s243, 256, %s245, [#allocation4], 128, 128, 8
    $region41: #{tpu_custom_call.1} parent=1 // pred_fallthru
      _
    // Predicated region
    $region42: #{tpu_custom_call.1} parent=1 // pred_check
      _
    $region43: #{tpu_custom_call.1} parent=1 // pred_check_branch
      %252 = sbr.rel (0) target = $region45
    $region44: #{tpu_custom_call.1} parent=1 // pred_region
      %254 = dma.done [#allocation4], 256
    $region45: #{tpu_custom_call.1} parent=1 // pred_fallthru
      _
    %255 = vsyncpa [#allocation3], 1
    %256 = vsyncpa [#allocation6], 1
    %257 = vsyncpa [#allocation9], 1
    %258 = vsyncpa [#allocation4], 1

</llo_original>
